<compile_context>
chip_gen: v6e
topology: v6e:2x2x1
jax: 0.10.0
libtpu: 0.0.40
codegen_flags: <defaults>
</compile_context>

<pallas_src>
import math

import jax
import jax.numpy as jnp
from jax import lax
from jax.experimental import pallas as pl
from jax.experimental.pallas import tpu as pltpu

_SUBLANES = 8
_LANES = 128
_CHUNK_ROWS = 512                 # rows cast + accumulated per inner step (256 KiB f32 temp)
_ACC_ROWS = 64                    # accumulator height: 8 independent (8,128) partial tiles
_MIN_BLOCKS = 4                   # target >= 4 grid steps (pipelining + even 2-TC split)
_PALLAS_MIN_ELEMS = 4 * _SUBLANES * _LANES   # below this, jnp.mean wins on launch overhead


def _round_up(x, m):
    return ((x + m - 1) // m) * m


def _default_block_bytes():
    """Per-block input bytes, sized per TPU generation.

    The double-buffered input must stay under the default scoped-VMEM budget:
    v5e (and unknown/older parts) default ~16 MiB -> 4 MiB blocks;
    v6e/v7x default ~32 MiB -> 8 MiB blocks.
    """
    try:
        kind = jax.devices()[0].device_kind.lower()
    except Exception:
        kind = ""
    if "v6" in kind or "v7" in kind:
        return 8 * 1024 * 1024
    return 4 * 1024 * 1024


def _tree_sum(parts):
    """Pairwise (log-depth) sum of a list of same-shaped arrays."""
    parts = list(parts)
    while len(parts) > 1:
        nxt = [parts[i] + parts[i + 1] for i in range(0, len(parts) - 1, 2)]
        if len(parts) % 2:
            nxt.append(parts[-1])
        parts = nxt
    return parts[0]


def _choose_tiling(rows, dtype_bytes, max_rows_per_block):
    """Pick (rows_per_block, num_blocks, chunk_rows, acc_rows, last_valid_rows)."""
    if max_rows_per_block is None:
        budget_rows = _default_block_bytes() // (_LANES * dtype_bytes)
    else:
        budget_rows = int(max_rows_per_block)
    budget_rows = max(_SUBLANES, (budget_rows // _SUBLANES) * _SUBLANES)
    if budget_rows > _CHUNK_ROWS:
        budget_rows = (budget_rows // _CHUNK_ROWS) * _CHUNK_ROWS

    rows_per_block = min(budget_rows, _round_up(rows, _SUBLANES))
    if rows_per_block > _CHUNK_ROWS:
        rows_per_block = _round_up(rows_per_block, _CHUNK_ROWS)

    # Guarantee several grid steps on large inputs: derive the block size from
    # a target block count so grid=(1,) (no DMA/compute overlap, one idle v7x
    # core) never happens when there is enough data to split.
    if rows >= _MIN_BLOCKS * _CHUNK_ROWS:
        cap = _round_up(pl.cdiv(rows, _MIN_BLOCKS), _CHUNK_ROWS)
        rows_per_block = min(rows_per_block, cap)

    num_blocks = pl.cdiv(rows, rows_per_block)
    chunk_rows = min(_CHUNK_ROWS, rows_per_block)
    acc_rows = math.gcd(chunk_rows, _ACC_ROWS)          # multiple of 8, divides chunk
    last_valid_rows = rows - (num_blocks - 1) * rows_per_block
    return rows_per_block, num_blocks, chunk_rows, acc_rows, last_valid_rows


def _make_partial_sum_kernel(rows_per_block, chunk_rows, acc_rows,
                             num_blocks, last_valid_rows):
    """Per-block partial sum.

    y_ref  : (rows_per_block, 128) VMEM tile of the (rows, 128) slab
    out_ref: (8, 128) f32 partial sum for this block
    """
    ragged = (last_valid_rows != rows_per_block)
    num_chunks = rows_per_block // chunk_rows
    folds = chunk_rows // acc_rows

    def kernel(y_ref, out_ref):
        i = pl.program_id(0)
        if ragged:
            # Rows past the logical array in the (padded) last block hold
            # unspecified data; zero them.  All constants here are static, so
            # no scalar-prefetch / host-side padding is needed.  Hoisted out
            # of the chunk loop so the iota is computed once per block.
            limit = jnp.where(i == num_blocks - 1, last_valid_rows, rows_per_block)
            base_rid = lax.broadcasted_iota(jnp.int32, (chunk_rows, 1), 0)

        def chunk_body(c, acc):
            start = pl.multiple_of(c * chunk_rows, chunk_rows)
            # Incremental cast: only one chunk (<=256 KiB) is ever f32 in VMEM.
            yc = y_ref[pl.ds(start, chunk_rows), :].astype(jnp.float32)
            if ragged:
                yc = jnp.where(base_rid + start < limit, yc, 0.0)
            # `folds` independent (acc_rows,128) partials folded with a
            # log-depth add tree -> no long serial vadd chain on v7x.
            parts = [yc[f * acc_rows:(f + 1) * acc_rows, :] for f in range(folds)]
            return acc + _tree_sum(parts)

        acc = lax.fori_loop(0, num_chunks, chunk_body,
                            jnp.zeros((acc_rows, _LANES), jnp.float32))
        # Fold the (acc_rows,128) accumulator down to one (8,128) tile.
        tiles = [acc[t * _SUBLANES:(t + 1) * _SUBLANES, :]
                 for t in range(acc_rows // _SUBLANES)]
        out_ref[...] = _tree_sum(tiles)

    return kernel


def custom_loss(y_pred, y_true=None, smooth=1, *, force_pallas=False,
                max_rows_per_block=None):
    """Pallas equivalent of CustomLoss.forward: returns mean(y_pred) (f32 scalar).

    y_true and smooth are accepted for signature parity but unused, exactly
    like the PyTorch reference forward.
    """
    del y_true, smooth
    total = int(y_pred.size)
    if total == 0:
        return jnp.float32(jnp.nan)      # torch.mean of an empty tensor is NaN

    flat = y_pred.reshape(-1)

    aligned = (total % _LANES == 0)
    use_pallas = aligned and (force_pallas or total >= _PALLAS_MIN_ELEMS)
    if not use_pallas:
        # * tiny inputs (the module's real (batch, 1) DNN output): launch +
        #   DMA overhead dwarfs the compute; jnp.mean is strictly faster.
        # * totals not a multiple of 128: no zero-copy lane-dense 2-D view of
        #   the buffer exists, and XLA's reduce is already one HBM pass, so a
        #   Pallas path would only add a relayout copy.
        return jnp.mean(flat.astype(jnp.float32))

    rows = total // _LANES
    dtype_bytes = jnp.dtype(y_pred.dtype).itemsize
    (rows_per_block, num_blocks, chunk_rows,
     acc_rows, last_valid_rows) = _choose_tiling(rows, dtype_bytes, max_rows_per_block)

    # Lane-dense (rows, 128) view.  NOTE: no jnp.pad -- a ragged last block is
    # handled by in-kernel masking, never by a padded copy of the input.
    slab = flat.reshape(rows, _LANES)

    kernel = _make_partial_sum_kernel(rows_per_block, chunk_rows, acc_rows,
                                      num_blocks, last_valid_rows)

    partials = pl.pallas_call(
        kernel,
        out_shape=jax.ShapeDtypeStruct((num_blocks, _SUBLANES, _LANES), jnp.float32),
        grid_spec=pltpu.PrefetchScalarGridSpec(
            num_scalar_prefetch=0,
            grid=(num_blocks,),
            in_specs=[pl.BlockSpec((rows_per_block, _LANES), lambda i: (i, 0))],
            out_specs=pl.BlockSpec((None, _SUBLANES, _LANES), lambda i: (i, 0, 0)),
        ),
        compiler_params=pltpu.CompilerParams(
            # Independent per-block partials: lets the runtime split the grid
            # across v7x's two TensorCores; neutral on single-TC v5e/v6e.
            # (Only switch to pltpu.CORE_PARALLEL if profiling shows one core idle.)
            dimension_semantics=("parallel",),
        ),
        cost_estimate=pl.CostEstimate(
            flops=total,
            transcendentals=0,
            bytes_accessed=total * dtype_bytes + num_blocks * _SUBLANES * _LANES * 4,
        ),
    )(slab)

    # Tiny finishing reduction (num_blocks x 8 x 128 f32) outside Pallas;
    # dividing by the true element count keeps the mean exact.
    # TODO(synk): the reference forward also print()s the mean (a Python side
    # effect); omitted so the script prints exactly "KERNEL_OK".
    return jnp.sum(partials) / jnp.float32(total)


if __name__ == "__main__":
    key = jax.random.PRNGKey(0)
    k1, k2, k3, k4, k5 = jax.random.split(key, 5)

    # 1) The module's actual usage: DNN output (batch, num_model_outputs) = (8, 1).
    #    Tiny and not 128-aligned -> XLA fast path.
    y_pred = jax.random.normal(k1, (8, 1), dtype=jnp.float32)
    y_true = jax.random.normal(k2, (8, 1), dtype=jnp.float32)
    loss_small = custom_loss(y_pred, y_true)
    jax.block_until_ready(loss_small)
    ref_small = jnp.mean(y_pred)
    assert jnp.allclose(loss_small, ref_small, atol=1e-6, rtol=1e-6), (loss_small, ref_small)

    # 2) Small lane-aligned f32 input forced through the Pallas path
    #    (single block, no masking).
    y_a = jax.random.normal(k3, (16, 128), dtype=jnp.float32)
    loss_a = custom_loss(y_a, force_pallas=True)
    jax.block_until_ready(loss_a)
    ref_a = jnp.mean(y_a)
    assert jnp.allclose(loss_a, ref_a, atol=1e-5, rtol=1e-5), (loss_a, ref_a)

    # 3) bf16 input with a ragged last block (40 rows, 16-row blocks -> 3 blocks,
    #    only 8 valid rows in the last one): exercises multi-block tiling, the
    #    in-kernel masking (no host-side padding), and incremental bf16->f32
    #    accumulation.
    y_b = jax.random.normal(k4, (40, 128), dtype=jnp.bfloat16)
    loss_b = custom_loss(y_b, force_pallas=True, max_rows_per_block=16)
    jax.block_until_ready(loss_b)
    ref_b = jnp.mean(y_b.astype(jnp.float32))
    assert jnp.allclose(loss_b, ref_b, atol=1e-3, rtol=1e-3), (loss_b, ref_b)

    # 4) Moderate f32 input taking the default auto-tiled path: 4096 rows ->
    #    4 parallel blocks of 1024 rows, 2 accumulation chunks per block.
    y_c = jax.random.normal(k5, (512, 1024), dtype=jnp.float32)
    loss_c = custom_loss(y_c)
    jax.block_until_ready(loss_c)
    ref_c = jnp.mean(y_c)
    assert jnp.allclose(loss_c, ref_c, atol=1e-5, rtol=1e-5), (loss_c, ref_c)

    print("KERNEL_OK")
</pallas_src>

<mosaic_0001>
module attributes {stable_mosaic.version = 11 : i64} {
  func.func @kernel(%arg0: i32, %arg1: memref<16x128xf32, #tpu.memory_space<vmem>>, %arg2: memref<1x8x128xf32, #tpu.memory_space<vmem>>) attributes {dimension_semantics = [#tpu.dimension_semantics<parallel>], iteration_bounds = array<i64: 1>, scalar_prefetch = 0 : i64, scratch_operands = 0 : i64, tpu.core_type = #tpu.core_type<tc>, window_params = [{transform_indices = @transform_0, window_bounds = array<i64: 16, 128>}, {transform_indices = @transform_1, window_bounds = array<i64: 1, 8, 128>}]} {
    %cst = arith.constant 0.000000e+00 : f32
    %0 = vector.broadcast %cst : f32 to vector<16x128xf32>
    %c0_i32 = arith.constant 0 : i32
    %c16_i32 = arith.constant 16 : i32
    %1 = arith.muli %c0_i32, %c16_i32 : i32
    %2 = tpu.assume_multiple %1, 16 : i32
    %3 = arith.index_cast %2 : i32 to index
    %c0 = arith.constant 0 : index
    %4 = vector.load %arg1[%3, %c0] : memref<16x128xf32, #tpu.memory_space<vmem>>, vector<16x128xf32>
    %5 = arith.addf %0, %4 : vector<16x128xf32>
    %c1_i32 = arith.constant 1 : i32
    %6 = vector.extract_strided_slice %5 {offsets = [0, 0], sizes = [8, 128], strides = [1, 1]} : vector<16x128xf32> to vector<8x128xf32>
    %7 = vector.extract_strided_slice %5 {offsets = [8, 0], sizes = [8, 128], strides = [1, 1]} : vector<16x128xf32> to vector<8x128xf32>
    %8 = arith.addf %6, %7 : vector<8x128xf32>
    %c0_0 = arith.constant 0 : index
    %c0_1 = arith.constant 0 : index
    %c0_2 = arith.constant 0 : index
    %9 = vector.load %arg2[%c0_0, %c0_1, %c0_2] : memref<1x8x128xf32, #tpu.memory_space<vmem>>, vector<1x8x128xf32>
    %10 = vector.shape_cast %9 : vector<1x8x128xf32> to vector<8x128xf32>
    %11 = vector.shape_cast %8 : vector<8x128xf32> to vector<1x8x128xf32>
    tpu.vector_store %arg2[%c0_0, %c0_1, %c0_2], %11 {strides = array<i32>} : memref<1x8x128xf32, #tpu.memory_space<vmem>>, vector<1x8x128xf32>,
    return
  }
  func.func @transform_0(%arg0: i32) -> (i32, i32) {
    %c0_i32 = arith.constant 0 : i32
    %c0_i32_0 = arith.constant 0 : i32
    return %arg0, %c0_i32 : i32, i32
  }
  func.func @transform_1(%arg0: i32) -> (i32, i32, i32) {
    %c0_i32 = arith.constant 0 : i32
    %c0_i32_0 = arith.constant 0 : i32
    %c0_i32_1 = arith.constant 0 : i32
    return %arg0, %c0_i32, %c0_i32_0 : i32, i32, i32
  }
}

</mosaic_0001>

<llo_original>
// kernel: tpu_custom_call.1
$region0: #{tpu_custom_call.1}
  #allocation0 [shape = 'u32[]', space=smem, size = 0x4, offset = 0x4, fixed_abs, tag = 'smem constant byte address 0x4 - core index']
  #allocation1 [shape = 'u32[144,128]{1,0:T(1,128)}', space=vmem, size = 0x12000, scoped, tag = 'internal scratch']
  %s0 = inlined_call_operand.hbm [shape: f32[16,128], index: 0, kind: input, shape index: {}]
  %s1 = inlined_call_operand.hbm [shape: f32[1,8,128], index: 1, kind: output, shape index: {}]
  %s2 = sld [smem:[#allocation0]]
  $region18: #{tpu_custom_call.1} parent=0
    _
  %s4 = ssub.s32 1, %s2
  %s5 = scalar_select 0, %s4, %s2
  $region1: #{tpu_custom_call.1} parent=0
    #allocation2 [shape = 'u8[8192]{0}', space=vmem, size = 0x2000, scoped, tag = 'input window, operand 0, single buffered']
    #allocation3 [shape = 's32[1]{0}', space=sflag, size = 0x4, scoped, tag = 'scoped memory for tpu_custom_call.1']
    #allocation4 [shape = 's32[1]{0}', space=sflag, size = 0x4, scoped, tag = 'scoped memory for tpu_custom_call.1']
    #allocation5 [shape = 'u8[4096]{0}', space=vmem, size = 0x1000, scoped, tag = 'output window, operand 0, single buffered']
    %6 = vsyncpa [#allocation3], 0
    %7 = vsyncpa [#allocation4], 0
    // Predicated region
    $region2: #{tpu_custom_call.1} parent=1 // pred_check
      _
    $region3: #{tpu_custom_call.1} parent=1 // pred_check_branch
      %9 = sbr.rel (0) target = $region5
    $region4: #{tpu_custom_call.1} parent=1 // pred_region
      %s11 = ssub.s32 256, 256
      %12 = vsyncadd [#allocation3], %s11
      %s13 = sshll.u32 [#allocation2], 4
      %s14 = int_to_ptr.vmem [resolvable:$true] %s13
      %19 = dma.hbm_to_vmem [thread:$0]  %s0, 256, %s14, [#allocation3], 128, 128, 8
    $region5: #{tpu_custom_call.1} parent=1 // pred_fallthru
      _
    // Predicated region
    $region6: #{tpu_custom_call.1} parent=1 // pred_check
      _
    $region7: #{tpu_custom_call.1} parent=1 // pred_check_branch
      %21 = sbr.rel (0) target = $region9
    $region8: #{tpu_custom_call.1} parent=1 // pred_region
      %22 = dma.done [#allocation3], 256
    $region9: #{tpu_custom_call.1} parent=1 // pred_fallthru
      _
    %v23 = vld [vmem:[#allocation2] sm:$0xff]
    %v24 = vld [vmem:[#allocation2 + $0x8] sm:$0xff]
    %v25 = vadd.f32 %v23, 0.0
    %v26 = vadd.f32 %v24, 0.0
    %v27 = vadd.f32 %v25, %v26
    %28 = vst [vmem:[#allocation5] sm:$0xff] %v27
    // Predicated region
    $region10: #{tpu_custom_call.1} parent=1 // pred_check
      _
    $region11: #{tpu_custom_call.1} parent=1 // pred_check_branch
      %30 = sbr.rel (0) target = $region13
    $region12: #{tpu_custom_call.1} parent=1 // pred_region
      %s32 = ssub.s32 128, 128
      %33 = vsyncadd [#allocation4], %s32
      %s35 = sshll.u32 [#allocation5], 4
      %s36 = int_to_ptr.vmem [resolvable:$true] %s35
      %38 = dma.vmem_to_hbm [thread:$0]  %s36, 128, %s1, [#allocation4]
    $region13: #{tpu_custom_call.1} parent=1 // pred_fallthru
      _
    // Predicated region
    $region14: #{tpu_custom_call.1} parent=1 // pred_check
      _
    $region15: #{tpu_custom_call.1} parent=1 // pred_check_branch
      %40 = sbr.rel (0) target = $region17
    $region16: #{tpu_custom_call.1} parent=1 // pred_region
      %41 = dma.done [#allocation4], 128
    $region17: #{tpu_custom_call.1} parent=1 // pred_fallthru
      _
    %42 = vsyncpa [#allocation3], 1
    %43 = vsyncpa [#allocation4], 1

</llo_original>
